<compile_context>
chip_gen: v6e
topology: v6e:2x2x1
jax: 0.10.0
libtpu: 0.0.40
codegen_flags: <defaults>
</compile_context>

<pallas_src>
import functools

import jax
import jax.numpy as jnp
from jax.experimental import pallas as pl
from jax.experimental.pallas import tpu as pltpu

BF16 = jnp.bfloat16
F32 = jnp.float32


# ---------------------------------------------------------------------------
# Shared cell math (f32 elementwise, bf16 MXU operands).
# ---------------------------------------------------------------------------
def _gates_to_hc(gates, c_prev):
    """torch.nn.LSTMCell gate order (i, f, g, o); everything f32."""
    H = c_prev.shape[-1]
    i = jax.nn.sigmoid(gates[:, 0 * H:1 * H])
    f = jax.nn.sigmoid(gates[:, 1 * H:2 * H])
    g = jnp.tanh(gates[:, 2 * H:3 * H])
    o = jax.nn.sigmoid(gates[:, 3 * H:4 * H])
    c_new = f * c_prev + i * g
    h_new = o * jnp.tanh(c_new)
    return h_new, c_new


def _cell(x_bf16, h_prev, c_prev, wx_ref, wh_ref, b_ref):
    """Split-accumulation LSTM cell: dot(x, Wx) + dot(h, Wh) + b, f32 acc."""
    gates = (jnp.dot(x_bf16, wx_ref[...], preferred_element_type=F32)
             + jnp.dot(h_prev.astype(BF16), wh_ref[...],
                       preferred_element_type=F32)
             + b_ref[...])
    return _gates_to_hc(gates, c_prev)


def _rowcat(stg_ref, top, bot):
    """Row-concatenate two f32 tiles via a small VMEM scratch; return bf16."""
    n = top.shape[0]
    stg_ref[0:n, :] = top
    stg_ref[n:, :] = bot
    return stg_ref[...].astype(BF16)


# ---------------------------------------------------------------------------
# Fused single-step kernel (one pallas_call = one skLSTM.forward).
# ---------------------------------------------------------------------------
def _sklstm_step_kernel(q_ref, h1p_ref, c1p_ref, h2p_ref, c2p_ref,
                        h3p_ref, c3p_ref,
                        w1x, w1h, b1, w2x, w2h, b2, w3x, w3h, b3,
                        h1_ref, c1_ref, h2_ref, c2_ref, h3_ref, c3_ref,
                        stg2, stg3):
    h1p = h1p_ref[...]
    h2p = h2p_ref[...]
    h3p = h3p_ref[...]

    h1, c1 = _cell(q_ref[...].astype(BF16), h1p, c1p_ref[...], w1x, w1h, b1)
    x1 = _rowcat(stg2, h1p, h1)            # cat(lastH1, h1)  (old first)
    h2, c2 = _cell(x1, h2p, c2p_ref[...], w2x, w2h, b2)
    x2 = _rowcat(stg3, h2, h2p)            # cat(h2, lastH2)  (new first)
    h3, c3 = _cell(x2, h3p, c3p_ref[...], w3x, w3h, b3)

    h1_ref[...] = h1
    c1_ref[...] = c1
    h2_ref[...] = h2
    c2_ref[...] = c2
    h3_ref[...] = h3
    c3_ref[...] = c3


@jax.jit
def sklstm_step(q, h1, c1, h2, c2, h3, c3, p1, p2, p3):
    dd = q.shape[0]
    H = h1.shape[-1]
    vmem = pl.BlockSpec(memory_space=pltpu.MemorySpace.VMEM)
    out_shapes = (
        jax.ShapeDtypeStruct((dd, H), F32),
        jax.ShapeDtypeStruct((dd, H), F32),
        jax.ShapeDtypeStruct((2 * dd, H), F32),
        jax.ShapeDtypeStruct((2 * dd, H), F32),
        jax.ShapeDtypeStruct((4 * dd, H), F32),
        jax.ShapeDtypeStruct((4 * dd, H), F32),
    )
    return pl.pallas_call(
        _sklstm_step_kernel,
        out_shape=out_shapes,
        in_specs=[vmem] * 16,
        out_specs=(vmem,) * 6,
        scratch_shapes=[
            pltpu.VMEM((2 * dd, H), F32),
            pltpu.VMEM((4 * dd, H), F32),
        ],
    )(q, h1, c1, h2, c2, h3, c3,
      p1["wx"], p1["wh"], p1["b"],
      p2["wx"], p2["wh"], p2["b"],
      p3["wx"], p3["wh"], p3["b"])


# ---------------------------------------------------------------------------
# Whole-sequence kernel: grid over chunks of Tc timesteps, weights
# VMEM-resident, state carried in VMEM scratch, h3 streamed per chunk.
# ---------------------------------------------------------------------------
def _sklstm_seq_kernel(q_ref, h1p_ref, c1p_ref, h2p_ref, c2p_ref,
                       h3p_ref, c3p_ref,
                       w1x, w1h, b1, w2x, w2h, b2, w3x, w3h, b3,
                       h3seq_ref, h1f_ref, c1f_ref, h2f_ref, c2f_ref, c3f_ref,
                       h1s, c1s, h2s, c2s, h3s, c3s, stg2, stg3):
    dd = h1s.shape[0]
    Tc = q_ref.shape[0] // dd          # timesteps in this chunk (static)

    @pl.when(pl.program_id(0) == 0)
    def _():
        h1s[...] = h1p_ref[...]
        c1s[...] = c1p_ref[...]
        h2s[...] = h2p_ref[...]
        c2s[...] = c2p_ref[...]
        h3s[...] = h3p_ref[...]
        c3s[...] = c3p_ref[...]

    # Cell-1 input projection hoisted out of the recurrence:
    # one (Tc*dd, Din) x (Din, 4H) MXU GEMM per chunk.
    u = (jnp.dot(q_ref[...].astype(BF16), w1x[...],
                 preferred_element_type=F32) + b1[...])

    h1v, c1v = h1s[...], c1s[...]
    h2v, c2v = h2s[...], c2s[...]
    h3v, c3v = h3s[...], c3s[...]

    for t in range(Tc):                # statically unrolled recurrence
        # cell 1: only the recurrent H x 4H dot remains on the critical path
        g1 = (u[t * dd:(t + 1) * dd, :]
              + jnp.dot(h1v.astype(BF16), w1h[...],
                        preferred_element_type=F32))
        h1n, c1n = _gates_to_hc(g1, c1v)

        # cell 2: input x1 = cat(lastH1, h1)
        x1 = _rowcat(stg2, h1v, h1n)
        h2n, c2n = _cell(x1, h2v, c2v, w2x, w2h, b2)

        # cell 3: input x2 = cat(h2, lastH2)
        x2 = _rowcat(stg3, h2n, h2v)
        h3n, c3n = _cell(x2, h3v, c3v, w3x, w3h, b3)

        h3seq_ref[t * 4 * dd:(t + 1) * 4 * dd, :] = h3n
        h1v, c1v, h2v, c2v, h3v, c3v = h1n, c1n, h2n, c2n, h3n, c3n

    # carry state to the next chunk (scratch persists across grid steps)
    h1s[...] = h1v
    c1s[...] = c1v
    h2s[...] = h2v
    c2s[...] = c2v
    h3s[...] = h3v
    c3s[...] = c3v

    @pl.when(pl.program_id(0) == pl.num_programs(0) - 1)
    def _():
        h1f_ref[...] = h1v
        c1f_ref[...] = c1v
        h2f_ref[...] = h2v
        c2f_ref[...] = c2v
        c3f_ref[...] = c3v             # final H3 is h3_seq[-1] (wrapper slice)


@functools.partial(jax.jit, static_argnames=("tc",))
def sklstm_sequence(qs, h1, c1, h2, c2, h3, c3, p1, p2, p3, *, tc):
    T, dd, Din = qs.shape
    H = h1.shape[-1]
    assert T % tc == 0, (T, tc)
    n_chunks = T // tc
    qs2d = qs.reshape(T * dd, Din)     # layout plumbing only (wrapper side)

    def const(a):
        return pl.BlockSpec(a.shape, lambda c: (0,) * a.ndim)

    in_specs = [
        pl.BlockSpec((tc * dd, Din), lambda c: (c, 0)),     # q chunk
        const(h1), const(c1), const(h2), const(c2), const(h3), const(c3),
        const(p1["wx"]), const(p1["wh"]), const(p1["b"]),
        const(p2["wx"]), const(p2["wh"]), const(p2["b"]),
        const(p3["wx"]), const(p3["wh"]), const(p3["b"]),
    ]
    out_specs = (
        pl.BlockSpec((tc * 4 * dd, H), lambda c: (c, 0)),   # h3 per chunk
        pl.BlockSpec((dd, H), lambda c: (0, 0)),            # final H1
        pl.BlockSpec((dd, H), lambda c: (0, 0)),            # final C1
        pl.BlockSpec((2 * dd, H), lambda c: (0, 0)),        # final H2
        pl.BlockSpec((2 * dd, H), lambda c: (0, 0)),        # final C2
        pl.BlockSpec((4 * dd, H), lambda c: (0, 0)),        # final C3
    )
    out_shapes = (
        jax.ShapeDtypeStruct((T * 4 * dd, H), F32),
        jax.ShapeDtypeStruct((dd, H), F32),
        jax.ShapeDtypeStruct((dd, H), F32),
        jax.ShapeDtypeStruct((2 * dd, H), F32),
        jax.ShapeDtypeStruct((2 * dd, H), F32),
        jax.ShapeDtypeStruct((4 * dd, H), F32),
    )
    h3seq2d, h1f, c1f, h2f, c2f, c3f = pl.pallas_call(
        _sklstm_seq_kernel,
        grid=(n_chunks,),
        out_shape=out_shapes,
        in_specs=in_specs,
        out_specs=out_specs,
        scratch_shapes=[
            pltpu.VMEM((dd, H), F32), pltpu.VMEM((dd, H), F32),
            pltpu.VMEM((2 * dd, H), F32), pltpu.VMEM((2 * dd, H), F32),
            pltpu.VMEM((4 * dd, H), F32), pltpu.VMEM((4 * dd, H), F32),
            pltpu.VMEM((2 * dd, H), F32),   # x1 row-cat staging
            pltpu.VMEM((4 * dd, H), F32),   # x2 row-cat staging
        ],
        compiler_params=pltpu.CompilerParams(
            dimension_semantics=("arbitrary",)),  # recurrence -> sequential
    )(qs2d, h1, c1, h2, c2, h3, c3,
      p1["wx"], p1["wh"], p1["b"],
      p2["wx"], p2["wh"], p2["b"],
      p3["wx"], p3["wh"], p3["b"])
    return h3seq2d.reshape(T, 4 * dd, H), h1f, c1f, h2f, c2f, c3f


def _pick_time_chunk(T, dd, max_chunk=32):
    """Largest divisor of T <= max_chunk whose row block is sublane-aligned."""
    best = T                            # full-array block is always legal
    for c in range(1, min(T, max_chunk) + 1):
        if T % c == 0 and (c * dd) % 8 == 0:
            best = c
    return best


# ---------------------------------------------------------------------------
# Parameters: mimic torch.nn.LSTMCell uniform(-k, k); prepack transposed
# weights as bf16 MXU operands, keep the (merged) bias in f32.
# ---------------------------------------------------------------------------
def init_lstm_params(key, in_dim, hidden):
    k = 1.0 / float(hidden) ** 0.5
    k1, k2, k3, k4 = jax.random.split(key, 4)
    w_ih = jax.random.uniform(k1, (4 * hidden, in_dim), F32, -k, k)
    w_hh = jax.random.uniform(k2, (4 * hidden, hidden), F32, -k, k)
    b_ih = jax.random.uniform(k3, (4 * hidden,), F32, -k, k)
    b_hh = jax.random.uniform(k4, (4 * hidden,), F32, -k, k)
    return dict(
        wx=w_ih.T.astype(BF16),          # (in_dim, 4H)  bf16
        wh=w_hh.T.astype(BF16),          # (hidden, 4H)  bf16
        b=(b_ih + b_hh)[None, :],        # (1, 4H)       f32
    )


# ---------------------------------------------------------------------------
# skLSTM: stateful module, forward semantics identical to the PyTorch code.
# ---------------------------------------------------------------------------
class SkLSTM:
    def __init__(self, dd, input_dim1, hidden_dim1, key):
        k1, k2, k3 = jax.random.split(key, 3)
        self.p1 = init_lstm_params(k1, input_dim1, hidden_dim1)
        self.p2 = init_lstm_params(k2, hidden_dim1, hidden_dim1)
        self.p3 = init_lstm_params(k3, hidden_dim1, hidden_dim1)
        ones = lambda t: jnp.ones((t, hidden_dim1), F32)
        self.lastH1, self.lastC1 = ones(dd), ones(dd)
        self.lastH2, self.lastC2 = ones(dd * 2), ones(dd * 2)
        self.lastH3, self.lastC3 = ones(dd * 4), ones(dd * 4)

    def forward(self, q):
        """One timestep: identical semantics to skLSTM.forward(q) in PyTorch."""
        h1, c1, h2, c2, h3, c3 = sklstm_step(
            q, self.lastH1, self.lastC1, self.lastH2, self.lastC2,
            self.lastH3, self.lastC3, self.p1, self.p2, self.p3)
        self.lastH1, self.lastC1 = h1, c1
        self.lastH2, self.lastC2 = h2, c2
        self.lastH3, self.lastC3 = h3, c3
        return h3

    def forward_sequence(self, qs, time_chunk=None):
        """T timesteps in a single pallas_call; returns h3 for every step."""
        T, dd, _ = qs.shape
        if time_chunk is None:
            time_chunk = _pick_time_chunk(T, dd)
        h3_seq, h1, c1, h2, c2, c3 = sklstm_sequence(
            qs, self.lastH1, self.lastC1, self.lastH2, self.lastC2,
            self.lastH3, self.lastC3, self.p1, self.p2, self.p3,
            tc=time_chunk)
        self.lastH1, self.lastC1 = h1, c1
        self.lastH2, self.lastC2 = h2, c2
        self.lastH3, self.lastC3 = h3_seq[-1], c3
        return h3_seq


# ---------------------------------------------------------------------------
# Pure-JAX reference (matching bf16 matmul precision) for correctness check.
# ---------------------------------------------------------------------------
def _ref_cell(x, h, c, p):
    H = h.shape[-1]
    gates = (jnp.dot(x.astype(BF16), p["wx"], preferred_element_type=F32)
             + jnp.dot(h.astype(BF16), p["wh"], preferred_element_type=F32)
             + p["b"])
    i = jax.nn.sigmoid(gates[:, :H])
    f = jax.nn.sigmoid(gates[:, H:2 * H])
    g = jnp.tanh(gates[:, 2 * H:3 * H])
    o = jax.nn.sigmoid(gates[:, 3 * H:])
    c_new = f * c + i * g
    return o * jnp.tanh(c_new), c_new


def _ref_step(q, st, p1, p2, p3):
    H1, C1, H2, C2, H3, C3 = st
    h1, c1 = _ref_cell(q, H1, C1, p1)
    x1 = jnp.concatenate((H1, h1), axis=0)      # uses OLD lastH1
    h2, c2 = _ref_cell(x1, H2, C2, p2)
    x2 = jnp.concatenate((h2, H2), axis=0)      # uses OLD lastH2
    h3, c3 = _ref_cell(x2, H3, C3, p3)
    return h3, (h1, c1, h2, c2, h3, c3)


if __name__ == "__main__":
    dd, input_dim1, hidden_dim1, T = 2, 16, 32, 8
    key = jax.random.PRNGKey(0)
    kp, kq = jax.random.split(key)
    qs = jax.random.normal(kq, (T, dd, input_dim1), F32)

    model = SkLSTM(dd, input_dim1, hidden_dim1, kp)

    # ---------------- pure-JAX stateful reference over T steps -------------
    ones = lambda t: jnp.ones((t, hidden_dim1), F32)
    st = (ones(dd), ones(dd), ones(2 * dd), ones(2 * dd),
          ones(4 * dd), ones(4 * dd))
    ref_outs = []
    for t in range(T):
        h3_r, st = _ref_step(qs[t], st, model.p1, model.p2, model.p3)
        ref_outs.append(h3_r)
    ref_outs = jnp.stack(ref_outs)

    # ---------------- path 1: per-step fused kernel (stateful forward) -----
    outs = jnp.stack([model.forward(qs[t]) for t in range(T)])
    outs = jax.block_until_ready(outs)
    assert outs.shape == (T, dd * 4, hidden_dim1), outs.shape
    err1 = float(jnp.max(jnp.abs(outs - ref_outs)))
    assert err1 < 2e-3, err1

    # ---------------- path 2: whole sequence, chunked (Tc=4, 2 chunks) -----
    model2 = SkLSTM(dd, input_dim1, hidden_dim1, kp)
    outs_seq = jax.block_until_ready(model2.forward_sequence(qs, time_chunk=4))
    assert outs_seq.shape == (T, dd * 4, hidden_dim1), outs_seq.shape
    err2 = float(jnp.max(jnp.abs(outs_seq - ref_outs)))
    assert err2 < 2e-3, err2
    # Final carried state matches the per-step path as well.
    assert float(jnp.max(jnp.abs(model2.lastH3 - model.lastH3))) < 2e-3
    assert float(jnp.max(jnp.abs(model2.lastC3 - model.lastC3))) < 2e-3

    print("KERNEL_OK")
</pallas_src>

<mosaic_0001>
module attributes {stable_mosaic.version = 11 : i64} {
  func.func @_sklstm_step_kernel(%arg0: memref<2x16xf32, #tpu.memory_space<vmem>>, %arg1: memref<2x32xf32, #tpu.memory_space<vmem>>, %arg2: memref<2x32xf32, #tpu.memory_space<vmem>>, %arg3: memref<4x32xf32, #tpu.memory_space<vmem>>, %arg4: memref<4x32xf32, #tpu.memory_space<vmem>>, %arg5: memref<8x32xf32, #tpu.memory_space<vmem>>, %arg6: memref<8x32xf32, #tpu.memory_space<vmem>>, %arg7: memref<16x128xbf16, #tpu.memory_space<vmem>>, %arg8: memref<32x128xbf16, #tpu.memory_space<vmem>>, %arg9: memref<1x128xf32, #tpu.memory_space<vmem>>, %arg10: memref<32x128xbf16, #tpu.memory_space<vmem>>, %arg11: memref<32x128xbf16, #tpu.memory_space<vmem>>, %arg12: memref<1x128xf32, #tpu.memory_space<vmem>>, %arg13: memref<32x128xbf16, #tpu.memory_space<vmem>>, %arg14: memref<32x128xbf16, #tpu.memory_space<vmem>>, %arg15: memref<1x128xf32, #tpu.memory_space<vmem>>, %arg16: memref<2x32xf32, #tpu.memory_space<vmem>>, %arg17: memref<2x32xf32, #tpu.memory_space<vmem>>, %arg18: memref<4x32xf32, #tpu.memory_space<vmem>>, %arg19: memref<4x32xf32, #tpu.memory_space<vmem>>, %arg20: memref<8x32xf32, #tpu.memory_space<vmem>>, %arg21: memref<8x32xf32, #tpu.memory_space<vmem>>, %arg22: memref<4x32xf32, #tpu.memory_space<vmem>>, %arg23: memref<8x32xf32, #tpu.memory_space<vmem>>) attributes {dimension_semantics = [], scalar_prefetch = 0 : i64, scratch_operands = 2 : i64, tpu.core_type = #tpu.core_type<tc>} {
    %c0 = arith.constant 0 : index
    %c0_0 = arith.constant 0 : index
    %0 = vector.load %arg1[%c0, %c0_0] : memref<2x32xf32, #tpu.memory_space<vmem>>, vector<2x32xf32>
    %c0_1 = arith.constant 0 : index
    %c0_2 = arith.constant 0 : index
    %1 = vector.load %arg3[%c0_1, %c0_2] : memref<4x32xf32, #tpu.memory_space<vmem>>, vector<4x32xf32>
    %c0_3 = arith.constant 0 : index
    %c0_4 = arith.constant 0 : index
    %2 = vector.load %arg5[%c0_3, %c0_4] : memref<8x32xf32, #tpu.memory_space<vmem>>, vector<8x32xf32>
    %c0_5 = arith.constant 0 : index
    %c0_6 = arith.constant 0 : index
    %3 = vector.load %arg0[%c0_5, %c0_6] : memref<2x16xf32, #tpu.memory_space<vmem>>, vector<2x16xf32>
    %4 = arith.truncf %3 : vector<2x16xf32> to vector<2x16xbf16>
    %c0_7 = arith.constant 0 : index
    %c0_8 = arith.constant 0 : index
    %5 = vector.load %arg2[%c0_7, %c0_8] : memref<2x32xf32, #tpu.memory_space<vmem>>, vector<2x32xf32>
    %c0_9 = arith.constant 0 : index
    %c0_10 = arith.constant 0 : index
    %6 = vector.load %arg7[%c0_9, %c0_10] : memref<16x128xbf16, #tpu.memory_space<vmem>>, vector<16x128xbf16>
    %cst = arith.constant dense<0.000000e+00> : vector<2x128xf32>
    %7 = tpu.matmul %4, %6, %cst {dimension_numbers = #tpu.dot_dimension_numbers<[1], [0], [0], [1], [0, 0, 1, 1], [], []>} : vector<2x16xbf16>, vector<16x128xbf16>, vector<2x128xf32> -> vector<2x128xf32>
    %8 = arith.truncf %0 : vector<2x32xf32> to vector<2x32xbf16>
    %c0_11 = arith.constant 0 : index
    %c0_12 = arith.constant 0 : index
    %9 = vector.load %arg8[%c0_11, %c0_12] : memref<32x128xbf16, #tpu.memory_space<vmem>>, vector<32x128xbf16>
    %cst_13 = arith.constant dense<0.000000e+00> : vector<2x128xf32>
    %10 = tpu.matmul %8, %9, %cst_13 {dimension_numbers = #tpu.dot_dimension_numbers<[1], [0], [0], [1], [0, 0, 1, 1], [], []>} : vector<2x32xbf16>, vector<32x128xbf16>, vector<2x128xf32> -> vector<2x128xf32>
    %11 = arith.addf %7, %10 : vector<2x128xf32>
    %c0_14 = arith.constant 0 : index
    %c0_15 = arith.constant 0 : index
    %12 = vector.load %arg9[%c0_14, %c0_15] : memref<1x128xf32, #tpu.memory_space<vmem>>, vector<1x128xf32>
    %13 = vector.broadcast %12 : vector<1x128xf32> to vector<2x128xf32>
    %14 = arith.addf %11, %13 : vector<2x128xf32>
    %15 = vector.extract_strided_slice %14 {offsets = [0, 0], sizes = [2, 32], strides = [1, 1]} : vector<2x128xf32> to vector<2x32xf32>
    %16 = arith.negf %15 : vector<2x32xf32>
    %17 = math.exp %16 : vector<2x32xf32>
    %cst_16 = arith.constant 1.000000e+00 : f32
    %18 = vector.broadcast %cst_16 : f32 to vector<2x32xf32>
    %19 = arith.addf %18, %17 : vector<2x32xf32>
    %20 = arith.divf %18, %19 : vector<2x32xf32>
    %21 = vector.extract_strided_slice %14 {offsets = [0, 32], sizes = [2, 32], strides = [1, 1]} : vector<2x128xf32> to vector<2x32xf32>
    %22 = arith.negf %21 : vector<2x32xf32>
    %23 = math.exp %22 : vector<2x32xf32>
    %cst_17 = arith.constant 1.000000e+00 : f32
    %24 = vector.broadcast %cst_17 : f32 to vector<2x32xf32>
    %25 = arith.addf %24, %23 : vector<2x32xf32>
    %26 = arith.divf %24, %25 : vector<2x32xf32>
    %27 = vector.extract_strided_slice %14 {offsets = [0, 64], sizes = [2, 32], strides = [1, 1]} : vector<2x128xf32> to vector<2x32xf32>
    %28 = math.tanh %27 : vector<2x32xf32>
    %29 = vector.extract_strided_slice %14 {offsets = [0, 96], sizes = [2, 32], strides = [1, 1]} : vector<2x128xf32> to vector<2x32xf32>
    %30 = arith.negf %29 : vector<2x32xf32>
    %31 = math.exp %30 : vector<2x32xf32>
    %cst_18 = arith.constant 1.000000e+00 : f32
    %32 = vector.broadcast %cst_18 : f32 to vector<2x32xf32>
    %33 = arith.addf %32, %31 : vector<2x32xf32>
    %34 = arith.divf %32, %33 : vector<2x32xf32>
    %35 = arith.mulf %26, %5 : vector<2x32xf32>
    %36 = arith.mulf %20, %28 : vector<2x32xf32>
    %37 = arith.addf %35, %36 : vector<2x32xf32>
    %38 = math.tanh %37 : vector<2x32xf32>
    %39 = arith.mulf %34, %38 : vector<2x32xf32>
    %c0_19 = arith.constant 0 : index
    %c0_20 = arith.constant 0 : index
    %40 = vector.load %arg22[%c0_19, %c0_20] : memref<4x32xf32, #tpu.memory_space<vmem>>, vector<2x32xf32>
    tpu.vector_store %arg22[%c0_19, %c0_20], %0 {strides = array<i32>} : memref<4x32xf32, #tpu.memory_space<vmem>>, vector<2x32xf32>,
    %c2 = arith.constant 2 : index
    %c0_21 = arith.constant 0 : index
    %41 = vector.load %arg22[%c2, %c0_21] : memref<4x32xf32, #tpu.memory_space<vmem>>, vector<2x32xf32>
    tpu.vector_store %arg22[%c2, %c0_21], %39 {strides = array<i32>} : memref<4x32xf32, #tpu.memory_space<vmem>>, vector<2x32xf32>,
    %c0_22 = arith.constant 0 : index
    %c0_23 = arith.constant 0 : index
    %42 = vector.load %arg22[%c0_22, %c0_23] : memref<4x32xf32, #tpu.memory_space<vmem>>, vector<4x32xf32>
    %43 = arith.truncf %42 : vector<4x32xf32> to vector<4x32xbf16>
    %c0_24 = arith.constant 0 : index
    %c0_25 = arith.constant 0 : index
    %44 = vector.load %arg4[%c0_24, %c0_25] : memref<4x32xf32, #tpu.memory_space<vmem>>, vector<4x32xf32>
    %c0_26 = arith.constant 0 : index
    %c0_27 = arith.constant 0 : index
    %45 = vector.load %arg10[%c0_26, %c0_27] : memref<32x128xbf16, #tpu.memory_space<vmem>>, vector<32x128xbf16>
    %cst_28 = arith.constant dense<0.000000e+00> : vector<4x128xf32>
    %46 = tpu.matmul %43, %45, %cst_28 {dimension_numbers = #tpu.dot_dimension_numbers<[1], [0], [0], [1], [0, 0, 1, 1], [], []>} : vector<4x32xbf16>, vector<32x128xbf16>, vector<4x128xf32> -> vector<4x128xf32>
    %47 = arith.truncf %1 : vector<4x32xf32> to vector<4x32xbf16>
    %c0_29 = arith.constant 0 : index
    %c0_30 = arith.constant 0 : index
    %48 = vector.load %arg11[%c0_29, %c0_30] : memref<32x128xbf16, #tpu.memory_space<vmem>>, vector<32x128xbf16>
    %cst_31 = arith.constant dense<0.000000e+00> : vector<4x128xf32>
    %49 = tpu.matmul %47, %48, %cst_31 {dimension_numbers = #tpu.dot_dimension_numbers<[1], [0], [0], [1], [0, 0, 1, 1], [], []>} : vector<4x32xbf16>, vector<32x128xbf16>, vector<4x128xf32> -> vector<4x128xf32>
    %50 = arith.addf %46, %49 : vector<4x128xf32>
    %c0_32 = arith.constant 0 : index
    %c0_33 = arith.constant 0 : index
    %51 = vector.load %arg12[%c0_32, %c0_33] : memref<1x128xf32, #tpu.memory_space<vmem>>, vector<1x128xf32>
    %52 = vector.broadcast %51 : vector<1x128xf32> to vector<4x128xf32>
    %53 = arith.addf %50, %52 : vector<4x128xf32>
    %54 = vector.extract_strided_slice %53 {offsets = [0, 0], sizes = [4, 32], strides = [1, 1]} : vector<4x128xf32> to vector<4x32xf32>
    %55 = arith.negf %54 : vector<4x32xf32>
    %56 = math.exp %55 : vector<4x32xf32>
    %cst_34 = arith.constant 1.000000e+00 : f32
    %57 = vector.broadcast %cst_34 : f32 to vector<4x32xf32>
    %58 = arith.addf %57, %56 : vector<4x32xf32>
    %59 = arith.divf %57, %58 : vector<4x32xf32>
    %60 = vector.extract_strided_slice %53 {offsets = [0, 32], sizes = [4, 32], strides = [1, 1]} : vector<4x128xf32> to vector<4x32xf32>
    %61 = arith.negf %60 : vector<4x32xf32>
    %62 = math.exp %61 : vector<4x32xf32>
    %cst_35 = arith.constant 1.000000e+00 : f32
    %63 = vector.broadcast %cst_35 : f32 to vector<4x32xf32>
    %64 = arith.addf %63, %62 : vector<4x32xf32>
    %65 = arith.divf %63, %64 : vector<4x32xf32>
    %66 = vector.extract_strided_slice %53 {offsets = [0, 64], sizes = [4, 32], strides = [1, 1]} : vector<4x128xf32> to vector<4x32xf32>
    %67 = math.tanh %66 : vector<4x32xf32>
    %68 = vector.extract_strided_slice %53 {offsets = [0, 96], sizes = [4, 32], strides = [1, 1]} : vector<4x128xf32> to vector<4x32xf32>
    %69 = arith.negf %68 : vector<4x32xf32>
    %70 = math.exp %69 : vector<4x32xf32>
    %cst_36 = arith.constant 1.000000e+00 : f32
    %71 = vector.broadcast %cst_36 : f32 to vector<4x32xf32>
    %72 = arith.addf %71, %70 : vector<4x32xf32>
    %73 = arith.divf %71, %72 : vector<4x32xf32>
    %74 = arith.mulf %65, %44 : vector<4x32xf32>
    %75 = arith.mulf %59, %67 : vector<4x32xf32>
    %76 = arith.addf %74, %75 : vector<4x32xf32>
    %77 = math.tanh %76 : vector<4x32xf32>
    %78 = arith.mulf %73, %77 : vector<4x32xf32>
    %c0_37 = arith.constant 0 : index
    %c0_38 = arith.constant 0 : index
    %79 = vector.load %arg23[%c0_37, %c0_38] : memref<8x32xf32, #tpu.memory_space<vmem>>, vector<4x32xf32>
    tpu.vector_store %arg23[%c0_37, %c0_38], %78 {strides = array<i32>} : memref<8x32xf32, #tpu.memory_space<vmem>>, vector<4x32xf32>,
    %c4 = arith.constant 4 : index
    %c0_39 = arith.constant 0 : index
    %80 = vector.load %arg23[%c4, %c0_39] : memref<8x32xf32, #tpu.memory_space<vmem>>, vector<4x32xf32>
    tpu.vector_store %arg23[%c4, %c0_39], %1 {strides = array<i32>} : memref<8x32xf32, #tpu.memory_space<vmem>>, vector<4x32xf32>,
    %c0_40 = arith.constant 0 : index
    %c0_41 = arith.constant 0 : index
    %81 = vector.load %arg23[%c0_40, %c0_41] : memref<8x32xf32, #tpu.memory_space<vmem>>, vector<8x32xf32>
    %82 = arith.truncf %81 : vector<8x32xf32> to vector<8x32xbf16>
    %c0_42 = arith.constant 0 : index
    %c0_43 = arith.constant 0 : index
    %83 = vector.load %arg6[%c0_42, %c0_43] : memref<8x32xf32, #tpu.memory_space<vmem>>, vector<8x32xf32>
    %c0_44 = arith.constant 0 : index
    %c0_45 = arith.constant 0 : index
    %84 = vector.load %arg13[%c0_44, %c0_45] : memref<32x128xbf16, #tpu.memory_space<vmem>>, vector<32x128xbf16>
    %cst_46 = arith.constant dense<0.000000e+00> : vector<8x128xf32>
    %85 = tpu.matmul %82, %84, %cst_46 {dimension_numbers = #tpu.dot_dimension_numbers<[1], [0], [0], [1], [0, 0, 1, 1], [], []>} : vector<8x32xbf16>, vector<32x128xbf16>, vector<8x128xf32> -> vector<8x128xf32>
    %86 = arith.truncf %2 : vector<8x32xf32> to vector<8x32xbf16>
    %c0_47 = arith.constant 0 : index
    %c0_48 = arith.constant 0 : index
    %87 = vector.load %arg14[%c0_47, %c0_48] : memref<32x128xbf16, #tpu.memory_space<vmem>>, vector<32x128xbf16>
    %cst_49 = arith.constant dense<0.000000e+00> : vector<8x128xf32>
    %88 = tpu.matmul %86, %87, %cst_49 {dimension_numbers = #tpu.dot_dimension_numbers<[1], [0], [0], [1], [0, 0, 1, 1], [], []>} : vector<8x32xbf16>, vector<32x128xbf16>, vector<8x128xf32> -> vector<8x128xf32>
    %89 = arith.addf %85, %88 : vector<8x128xf32>
    %c0_50 = arith.constant 0 : index
    %c0_51 = arith.constant 0 : index
    %90 = vector.load %arg15[%c0_50, %c0_51] : memref<1x128xf32, #tpu.memory_space<vmem>>, vector<1x128xf32>
    %91 = vector.broadcast %90 : vector<1x128xf32> to vector<8x128xf32>
    %92 = arith.addf %89, %91 : vector<8x128xf32>
    %93 = vector.extract_strided_slice %92 {offsets = [0, 0], sizes = [8, 32], strides = [1, 1]} : vector<8x128xf32> to vector<8x32xf32>
    %94 = arith.negf %93 : vector<8x32xf32>
    %95 = math.exp %94 : vector<8x32xf32>
    %cst_52 = arith.constant 1.000000e+00 : f32
    %96 = vector.broadcast %cst_52 : f32 to vector<8x32xf32>
    %97 = arith.addf %96, %95 : vector<8x32xf32>
    %98 = arith.divf %96, %97 : vector<8x32xf32>
    %99 = vector.extract_strided_slice %92 {offsets = [0, 32], sizes = [8, 32], strides = [1, 1]} : vector<8x128xf32> to vector<8x32xf32>
    %100 = arith.negf %99 : vector<8x32xf32>
    %101 = math.exp %100 : vector<8x32xf32>
    %cst_53 = arith.constant 1.000000e+00 : f32
    %102 = vector.broadcast %cst_53 : f32 to vector<8x32xf32>
    %103 = arith.addf %102, %101 : vector<8x32xf32>
    %104 = arith.divf %102, %103 : vector<8x32xf32>
    %105 = vector.extract_strided_slice %92 {offsets = [0, 64], sizes = [8, 32], strides = [1, 1]} : vector<8x128xf32> to vector<8x32xf32>
    %106 = math.tanh %105 : vector<8x32xf32>
    %107 = vector.extract_strided_slice %92 {offsets = [0, 96], sizes = [8, 32], strides = [1, 1]} : vector<8x128xf32> to vector<8x32xf32>
    %108 = arith.negf %107 : vector<8x32xf32>
    %109 = math.exp %108 : vector<8x32xf32>
    %cst_54 = arith.constant 1.000000e+00 : f32
    %110 = vector.broadcast %cst_54 : f32 to vector<8x32xf32>
    %111 = arith.addf %110, %109 : vector<8x32xf32>
    %112 = arith.divf %110, %111 : vector<8x32xf32>
    %113 = arith.mulf %104, %83 : vector<8x32xf32>
    %114 = arith.mulf %98, %106 : vector<8x32xf32>
    %115 = arith.addf %113, %114 : vector<8x32xf32>
    %116 = math.tanh %115 : vector<8x32xf32>
    %117 = arith.mulf %112, %116 : vector<8x32xf32>
    %c0_55 = arith.constant 0 : index
    %c0_56 = arith.constant 0 : index
    %118 = vector.load %arg16[%c0_55, %c0_56] : memref<2x32xf32, #tpu.memory_space<vmem>>, vector<2x32xf32>
    tpu.vector_store %arg16[%c0_55, %c0_56], %39 {strides = array<i32>} : memref<2x32xf32, #tpu.memory_space<vmem>>, vector<2x32xf32>,
    %c0_57 = arith.constant 0 : index
    %c0_58 = arith.constant 0 : index
    %119 = vector.load %arg17[%c0_57, %c0_58] : memref<2x32xf32, #tpu.memory_space<vmem>>, vector<2x32xf32>
    tpu.vector_store %arg17[%c0_57, %c0_58], %37 {strides = array<i32>} : memref<2x32xf32, #tpu.memory_space<vmem>>, vector<2x32xf32>,
    %c0_59 = arith.constant 0 : index
    %c0_60 = arith.constant 0 : index
    %120 = vector.load %arg18[%c0_59, %c0_60] : memref<4x32xf32, #tpu.memory_space<vmem>>, vector<4x32xf32>
    tpu.vector_store %arg18[%c0_59, %c0_60], %78 {strides = array<i32>} : memref<4x32xf32, #tpu.memory_space<vmem>>, vector<4x32xf32>,
    %c0_61 = arith.constant 0 : index
    %c0_62 = arith.constant 0 : index
    %121 = vector.load %arg19[%c0_61, %c0_62] : memref<4x32xf32, #tpu.memory_space<vmem>>, vector<4x32xf32>
    tpu.vector_store %arg19[%c0_61, %c0_62], %76 {strides = array<i32>} : memref<4x32xf32, #tpu.memory_space<vmem>>, vector<4x32xf32>,
    %c0_63 = arith.constant 0 : index
    %c0_64 = arith.constant 0 : index
    %122 = vector.load %arg20[%c0_63, %c0_64] : memref<8x32xf32, #tpu.memory_space<vmem>>, vector<8x32xf32>
    tpu.vector_store %arg20[%c0_63, %c0_64], %117 {strides = array<i32>} : memref<8x32xf32, #tpu.memory_space<vmem>>, vector<8x32xf32>,
    %c0_65 = arith.constant 0 : index
    %c0_66 = arith.constant 0 : index
    %123 = vector.load %arg21[%c0_65, %c0_66] : memref<8x32xf32, #tpu.memory_space<vmem>>, vector<8x32xf32>
    tpu.vector_store %arg21[%c0_65, %c0_66], %115 {strides = array<i32>} : memref<8x32xf32, #tpu.memory_space<vmem>>, vector<8x32xf32>,
    return
  }
}

</mosaic_0001>

<llo_original>
// kernel: sklstm_step.1
$region0: #{sklstm_step.1}
  #allocation0 [shape = 'u32[]', space=smem, size = 0x4, offset = 0x4, fixed_abs, tag = 'smem constant byte address 0x4 - core index']
  #allocation1 [shape = 'u32[144,128]{1,0:T(1,128)}', space=vmem, size = 0x12000, scoped, tag = 'internal scratch']
  #allocation2 [shape = 'f32[4,32]{1,0:T(4,128)}', space=vmem, size = 0x800, scoped, tag = 'scratch operand']
  #allocation3 [shape = 'f32[8,32]{1,0:T(8,128)}', space=vmem, size = 0x1000, scoped, tag = 'scratch operand']
  %s0 = inlined_call_operand.hbm [shape: f32[2,16], index: 0, kind: input, shape index: {}]
  %s1 = inlined_call_operand.hbm [shape: f32[2,32], index: 1, kind: input, shape index: {}]
  %s2 = inlined_call_operand.hbm [shape: f32[2,32], index: 2, kind: input, shape index: {}]
  %s3 = inlined_call_operand.vmem [shape: f32[4,32], index: 3, kind: input, shape index: {}]
  %s4 = inlined_call_operand.hbm [shape: f32[4,32], index: 4, kind: input, shape index: {}]
  %s5 = inlined_call_operand.hbm [shape: f32[8,32], index: 5, kind: input, shape index: {}]
  %s6 = inlined_call_operand.hbm [shape: f32[8,32], index: 6, kind: input, shape index: {}]
  %s7 = inlined_call_operand.hbm [shape: bf16[16,128], index: 7, kind: input, shape index: {}]
  %s8 = inlined_call_operand.hbm [shape: bf16[32,128], index: 8, kind: input, shape index: {}]
  %s9 = inlined_call_operand.vmem [shape: f32[1,128], index: 9, kind: input, shape index: {}]
  %s10 = inlined_call_operand.vmem [shape: bf16[32,128], index: 10, kind: input, shape index: {}]
  %s11 = inlined_call_operand.hbm [shape: bf16[32,128], index: 11, kind: input, shape index: {}]
  %s12 = inlined_call_operand.hbm [shape: f32[1,128], index: 12, kind: input, shape index: {}]
  %s13 = inlined_call_operand.hbm [shape: bf16[32,128], index: 13, kind: input, shape index: {}]
  %s14 = inlined_call_operand.hbm [shape: bf16[32,128], index: 14, kind: input, shape index: {}]
  %s15 = inlined_call_operand.vmem [shape: f32[1,128], index: 15, kind: input, shape index: {}]
  %s16 = inlined_call_operand.hbm [shape: f32[2,32], index: 16, kind: output, shape index: {0}]
  %s17 = inlined_call_operand.hbm [shape: f32[2,32], index: 17, kind: output, shape index: {1}]
  %s18 = inlined_call_operand.hbm [shape: f32[4,32], index: 18, kind: output, shape index: {2}]
  %s19 = inlined_call_operand.hbm [shape: f32[4,32], index: 19, kind: output, shape index: {3}]
  %s20 = inlined_call_operand.hbm [shape: f32[8,32], index: 20, kind: output, shape index: {4}]
  %s21 = inlined_call_operand.hbm [shape: f32[8,32], index: 21, kind: output, shape index: {5}]
  %22 = xla_tuple %s16, %s17, %s18, %s19, %s20, %s21
  %s23 = sld [smem:[#allocation0]]
  $region162: #{sklstm_step.1} parent=0
    _
  %s25 = ssub.s32 1, %s23
  %s26 = scalar_select 0, %s25, %s23
  $region1: #{sklstm_step.1} parent=0
    #allocation4 [shape = 'u8[1024]{0}', space=vmem, size = 0x400, scoped, tag = 'input window, operand 0, single buffered']
    #allocation5 [shape = 's32[1]{0}', space=sflag, size = 0x4, scoped, tag = 'scoped memory for sklstm_step.1']
    #allocation6 [shape = 's32[1]{0}', space=sflag, size = 0x4, scoped, tag = 'scoped memory for sklstm_step.1']
    #allocation7 [shape = 'u8[1024]{0}', space=vmem, size = 0x400, scoped, tag = 'input window, operand 1, single buffered']
    #allocation8 [shape = 's32[1]{0}', space=sflag, size = 0x4, scoped, tag = 'scoped memory for sklstm_step.1']
    #allocation9 [shape = 'u8[1024]{0}', space=vmem, size = 0x400, scoped, tag = 'input window, operand 2, single buffered']
    #allocation10 [shape = 'u8[2048]{0}', space=vmem, size = 0x800, scoped, tag = 'input window, operand 4, single buffered']
    #allocation11 [shape = 's32[1]{0}', space=sflag, size = 0x4, scoped, tag = 'scoped memory for sklstm_step.1']
    #allocation12 [shape = 'u8[4096]{0}', space=vmem, size = 0x1000, scoped, tag = 'input window, operand 5, single buffered']
    #allocation13 [shape = 'u8[4096]{0}', space=vmem, size = 0x1000, scoped, tag = 'input window, operand 6, single buffered']
    #allocation14 [shape = 's32[1]{0}', space=sflag, size = 0x4, scoped, tag = 'scoped memory for sklstm_step.1']
    #allocation15 [shape = 'u8[4096]{0}', space=vmem, size = 0x1000, scoped, tag = 'input window, operand 7, single buffered']
    #allocation16 [shape = 'u8[8192]{0}', space=vmem, size = 0x2000, scoped, tag = 'input window, operand 8, single buffered']
    #allocation17 [shape = 's32[1]{0}', space=sflag, size = 0x4, scoped, tag = 'scoped memory for sklstm_step.1']
    #allocation18 [shape = 'u8[8192]{0}', space=vmem, size = 0x2000, scoped, tag = 'input window, operand 11, single buffered']
    #allocation19 [shape = 'u8[512]{0}', space=vmem, size = 0x400, scoped, tag = 'input window, operand 12, single buffered']
    #allocation20 [shape = 's32[1]{0}', space=sflag, size = 0x4, scoped, tag = 'scoped memory for sklstm_step.1']
    #allocation21 [shape = 'u8[8192]{0}', space=vmem, size = 0x2000, scoped, tag = 'input window, operand 13, single buffered']
    #allocation22 [shape = 'u8[8192]{0}', space=vmem, size = 0x2000, scoped, tag = 'input window, operand 14, single buffered']
    #allocation23 [shape = 's32[1]{0}', space=sflag, size = 0x4, scoped, tag = 'scoped memory for sklstm_step.1']
    #allocation24 [shape = 'u8[1024]{0}', space=vmem, size = 0x400, scoped, tag = 'output window, operand 0, single buffered']
    #allocation25 [shape = 'u8[1024]{0}', space=vmem, size = 0x400, scoped, tag = 'output window, operand 1, single buffered']
    #allocation26 [shape = 's32[1]{0}', space=sflag, size = 0x4, scoped, tag = 'scoped memory for sklstm_step.1']
    #allocation27 [shape = 'u8[2048]{0}', space=vmem, size = 0x800, scoped, tag = 'output window, operand 2, single buffered']
    #allocation28 [shape = 'u8[2048]{0}', space=vmem, size = 0x800, scoped, tag = 'output window, operand 3, single buffered']
    #allocation29 [shape = 's32[1]{0}', space=sflag, size = 0x4, scoped, tag = 'scoped memory for sklstm_step.1']
    #allocation30 [shape = 'u8[4096]{0}', space=vmem, size = 0x1000, scoped, tag = 'output window, operand 4, single buffered']
    #allocation31 [shape = 'u8[4096]{0}', space=vmem, size = 0x1000, scoped, tag = 'output window, operand 5, single buffered']
    #allocation32 [shape = 's32[1]{0}', space=sflag, size = 0x4, scoped, tag = 'scoped memory for sklstm_step.1']
    %27 = vsyncpa [#allocation5], 0
    %28 = vsyncpa [#allocation8], 0
    %29 = vsyncpa [#allocation11], 0
    %30 = vsyncpa [#allocation14], 0
    %31 = vsyncpa [#allocation17], 0
    %32 = vsyncpa [#allocation20], 0
    %33 = vsyncpa [#allocation23], 0
    %34 = vsyncpa [#allocation6], 0
    %35 = vsyncpa [#allocation26], 0
    %36 = vsyncpa [#allocation29], 0
    %37 = vsyncpa [#allocation32], 0
    // Predicated region
    $region2: #{sklstm_step.1} parent=1 // pred_check
      _
    $region3: #{sklstm_step.1} parent=1 // pred_check_branch
      %39 = sbr.rel (0) target = $region5
    $region4: #{sklstm_step.1} parent=1 // pred_region
      %s41 = ssub.s32 32, 32
      %42 = vsyncadd [#allocation5], %s41
      %s44 = sshll.u32 [#allocation4], 4
      %s45 = int_to_ptr.vmem [resolvable:$true] %s44
      %47 = dma.hbm_to_vmem [thread:$0]  %s0, 32, %s45, [#allocation5]
    $region5: #{sklstm_step.1} parent=1 // pred_fallthru
      _
    // Predicated region
    $region6: #{sklstm_step.1} parent=1 // pred_check
      _
    $region7: #{sklstm_step.1} parent=1 // pred_check_branch
      %49 = sbr.rel (0) target = $region9
    $region8: #{sklstm_step.1} parent=1 // pred_region
      %s51 = ssub.s32 32, 32
      %52 = vsyncadd [#allocation8], %s51
      %s54 = sshll.u32 [#allocation7], 4
      %s55 = int_to_ptr.vmem [resolvable:$true] %s54
      %57 = dma.hbm_to_vmem [thread:$0]  %s1, 32, %s55, [#allocation8]
    $region9: #{sklstm_step.1} parent=1 // pred_fallthru
      _
    // Predicated region
    $region10: #{sklstm_step.1} parent=1 // pred_check
      _
    $region11: #{sklstm_step.1} parent=1 // pred_check_branch
      %59 = sbr.rel (0) target = $region13
    $region12: #{sklstm_step.1} parent=1 // pred_region
      %s61 = ssub.s32 32, 32
      %62 = vsyncadd [#allocation8], %s61
      %s64 = sshll.u32 [#allocation9], 4
      %s65 = int_to_ptr.vmem [resolvable:$true] %s64
      %67 = dma.hbm_to_vmem [thread:$0]  %s2, 32, %s65, [#allocation8]
    $region13: #{sklstm_step.1} parent=1 // pred_fallthru
      _
    // Predicated region
    $region14: #{sklstm_step.1} parent=1 // pred_check
      _
    $region15: #{sklstm_step.1} parent=1 // pred_check_branch
      %69 = sbr.rel (0) target = $region17
    $region16: #{sklstm_step.1} parent=1 // pred_region
      _
    $region17: #{sklstm_step.1} parent=1 // pred_fallthru
      _
    // Predicated region
    $region18: #{sklstm_step.1} parent=1 // pred_check
      _
    $region19: #{sklstm_step.1} parent=1 // pred_check_branch
      %71 = sbr.rel (0) target = $region21
    $region20: #{sklstm_step.1} parent=1 // pred_region
      %s73 = ssub.s32 64, 64
      %74 = vsyncadd [#allocation11], %s73
      %s76 = sshll.u32 [#allocation10], 4
      %s77 = int_to_ptr.vmem [resolvable:$true] %s76
      %79 = dma.hbm_to_vmem [thread:$0]  %s4, 64, %s77, [#allocation11]
    $region21: #{sklstm_step.1} parent=1 // pred_fallthru
      _
    // Predicated region
    $region22: #{sklstm_step.1} parent=1 // pred_check
      _
    $region23: #{sklstm_step.1} parent=1 // pred_check_branch
      %81 = sbr.rel (0) target = $region25
    $region24: #{sklstm_step.1} parent=1 // pred_region
      %s83 = ssub.s32 128, 128
      %84 = vsyncadd [#allocation11], %s83
      %s86 = sshll.u32 [#allocation12], 4
      %s87 = int_to_ptr.vmem [resolvable:$true] %s86
      %89 = dma.hbm_to_vmem [thread:$0]  %s5, 128, %s87, [#allocation11]
    $region25: #{sklstm_step.1} parent=1 // pred_fallthru
      _
    // Predicated region
    $region26: #{sklstm_step.1} parent=1 // pred_check
      _
    $region27: #{sklstm_step.1} parent=1 // pred_check_branch
      %91 = sbr.rel (0) target = $region29
    $region28: #{sklstm_step.1} parent=1 // pred_region
      %s93 = ssub.s32 128, 128
      %94 = vsyncadd [#allocation14], %s93
      %s96 = sshll.u32 [#allocation13], 4
      %s97 = int_to_ptr.vmem [resolvable:$true] %s96
      %99 = dma.hbm_to_vmem [thread:$0]  %s6, 128, %s97, [#allocation14]
    $region29: #{sklstm_step.1} parent=1 // pred_fallthru
      _
    // Predicated region
    $region30: #{sklstm_step.1} parent=1 // pred_check
      _
    $region31: #{sklstm_step.1} parent=1 // pred_check_branch
      %101 = sbr.rel (0) target = $region33
    $region32: #{sklstm_step.1} parent=1 // pred_region
      %s103 = ssub.s32 128, 128
      %104 = vsyncadd [#allocation14], %s103
      %s105 = sshll.u32 [#allocation15], 4
      %s106 = int_to_ptr.vmem [resolvable:$true] %s105
      %111 = dma.hbm_to_vmem [thread:$0]  %s7, 128, %s106, [#allocation14], 64, 64, 4
    $region33: #{sklstm_step.1} parent=1 // pred_fallthru
      _
    // Predicated region
    $region34: #{sklstm_step.1} parent=1 // pred_check
      _
    $region35: #{sklstm_step.1} parent=1 // pred_check_branch
      %113 = sbr.rel (0) target = $region37
    $region36: #{sklstm_step.1} parent=1 // pred_region
      %s115 = ssub.s32 256, 256
      %116 = vsyncadd [#allocation17], %s115
      %s117 = sshll.u32 [#allocation16], 4
      %s118 = int_to_ptr.vmem [resolvable:$true] %s117
      %123 = dma.hbm_to_vmem [thread:$0]  %s8, 256, %s118, [#allocation17], 64, 64, 4
    $region37: #{sklstm_step.1} parent=1 // pred_fallthru
      _
    // Predicated region
    $region38: #{sklstm_step.1} parent=1 // pred_check
      _
    $region39: #{sklstm_step.1} parent=1 // pred_check_branch
      %125 = sbr.rel (0) target = $region41
    $region40: #{sklstm_step.1} parent=1 // pred_region
      _
    $region41: #{sklstm_step.1} parent=1 // pred_fallthru
      _
    // Predicated region
    $region42: #{sklstm_step.1} parent=1 // pred_check
      _
    $region43: #{sklstm_step.1} parent=1 // pred_check_branch
      %127 = sbr.rel (0) target = $region45
    $region44: #{sklstm_step.1} parent=1 // pred_region
      _
    $region45: #{sklstm_step.1} parent=1 // pred_fallthru
      _
    // Predicated region
    $region46: #{sklstm_step.1} parent=1 // pred_check
      _
    $region47: #{sklstm_step.1} parent=1 // pred_check_branch
      %129 = sbr.rel (0) target = $region49
    $region48: #{sklstm_step.1} parent=1 // pred_region
      %s131 = ssub.s32 256, 256
      %132 = vsyncadd [#allocation17], %s131
      %s133 = sshll.u32 [#allocation18], 4
      %s134 = int_to_ptr.vmem [resolvable:$true] %s133
      %139 = dma.hbm_to_vmem [thread:$0]  %s11, 256, %s134, [#allocation17], 64, 64, 4
    $region49: #{sklstm_step.1} parent=1 // pred_fallthru
      _
    // Predicated region
    $region50: #{sklstm_step.1} parent=1 // pred_check
      _
    $region51: #{sklstm_step.1} parent=1 // pred_check_branch
      %141 = sbr.rel (0) target = $region53
    $region52: #{sklstm_step.1} parent=1 // pred_region
      %s143 = ssub.s32 16, 16
      %144 = vsyncadd [#allocation20], %s143
      %s146 = sshll.u32 [#allocation19], 4
      %s147 = int_to_ptr.vmem [resolvable:$true] %s146
      %149 = dma.hbm_to_vmem [thread:$0]  %s12, 16, %s147, [#allocation20]
    $region53: #{sklstm_step.1} parent=1 // pred_fallthru
      _
    // Predicated region
    $region54: #{sklstm_step.1} parent=1 // pred_check
      _
    $region55: #{sklstm_step.1} parent=1 // pred_check_branch
      %151 = sbr.rel (0) target = $region57
    $region56: #{sklstm_step.1} parent=1 // pred_region
      %s153 = ssub.s32 256, 256
      %154 = vsyncadd [#allocation20], %s153
      %s155 = sshll.u32 [#allocation21], 4
      %s156 = int_to_ptr.vmem [resolvable:$true] %s155
      %161 = dma.hbm_to_vmem [thread:$0]  %s13, 256, %s156, [#allocation20], 64, 64, 4
    $region57: #{sklstm_step.1} parent=1 // pred_fallthru
      _
    // Predicated region
    $region58: #{sklstm_step.1} parent=1 // pred_check
      _
    $region59: #{sklstm_step.1} parent=1 // pred_check_branch
      %163 = sbr.rel (0) target = $region61
    $region60: #{sklstm_step.1} parent=1 // pred_region
      %s165 = ssub.s32 256, 256
      %166 = vsyncadd [#allocation23], %s165
      %s167 = sshll.u32 [#allocation22], 4
      %s168 = int_to_ptr.vmem [resolvable:$true] %s167
      %173 = dma.hbm_to_vmem [thread:$0]  %s14, 256, %s168, [#allocation23], 64, 64, 4
    $region61: #{sklstm_step.1} parent=1 // pred_fallthru
      _
    // Predicated region
    $region62: #{sklstm_step.1} parent=1 // pred_check
      _
    $region63: #{sklstm_step.1} parent=1 // pred_check_branch
      %175 = sbr.rel (0) target = $region65
    $region64: #{sklstm_step.1} parent=1 // pred_region
      _
    $region65: #{sklstm_step.1} parent=1 // pred_fallthru
      _
    // Predicated region
    $region66: #{sklstm_step.1} parent=1 // pred_check
      _
    $region67: #{sklstm_step.1} parent=1 // pred_check_branch
      %177 = sbr.rel (0) target = $region69
    $region68: #{sklstm_step.1} parent=1 // pred_region
      %178 = dma.done [#allocation5], 32
    $region69: #{sklstm_step.1} parent=1 // pred_fallthru
      _
    // Predicated region
    $region70: #{sklstm_step.1} parent=1 // pred_check
      _
    $region71: #{sklstm_step.1} parent=1 // pred_check_branch
      %180 = sbr.rel (0) target = $region73
    $region72: #{sklstm_step.1} parent=1 // pred_region
      %181 = dma.done [#allocation8], 32
    $region73: #{sklstm_step.1} parent=1 // pred_fallthru
      _
    // Predicated region
    $region74: #{sklstm_step.1} parent=1 // pred_check
      _
    $region75: #{sklstm_step.1} parent=1 // pred_check_branch
      %183 = sbr.rel (0) target = $region77
    $region76: #{sklstm_step.1} parent=1 // pred_region
      %184 = dma.done [#allocation8], 32
    $region77: #{sklstm_step.1} parent=1 // pred_fallthru
      _
    // Predicated region
    $region78: #{sklstm_step.1} parent=1 // pred_check
      _
    $region79: #{sklstm_step.1} parent=1 // pred_check_branch
      %186 = sbr.rel (0) target = $region81
    $region80: #{sklstm_step.1} parent=1 // pred_region
      %187 = dma.done [#allocation11], 64
    $region81: #{sklstm_step.1} parent=1 // pred_fallthru
      _
    // Predicated region
    $region82: #{sklstm_step.1} parent=1 // pred_check
      _
    $region83: #{sklstm_step.1} parent=1 // pred_check_branch
      %189 = sbr.rel (0) target = $region85
    $region84: #{sklstm_step.1} parent=1 // pred_region
      %190 = dma.done [#allocation11], 128
    $region85: #{sklstm_step.1} parent=1 // pred_fallthru
      _
    // Predicated region
    $region86: #{sklstm_step.1} parent=1 // pred_check
      _
    $region87: #{sklstm_step.1} parent=1 // pred_check_branch
      %192 = sbr.rel (0) target = $region89
    $region88: #{sklstm_step.1} parent=1 // pred_region
      %193 = dma.done [#allocation14], 128
    $region89: #{sklstm_step.1} parent=1 // pred_fallthru
      _
    // Predicated region
    $region90: #{sklstm_step.1} parent=1 // pred_check
      _
    $region91: #{sklstm_step.1} parent=1 // pred_check_branch
      %195 = sbr.rel (0) target = $region93
    $region92: #{sklstm_step.1} parent=1 // pred_region
      %196 = dma.done [#allocation14], 128
    $region93: #{sklstm_step.1} parent=1 // pred_fallthru
      _
    // Predicated region
    $region94: #{sklstm_step.1} parent=1 // pred_check
      _
    $region95: #{sklstm_step.1} parent=1 // pred_check_branch
      %198 = sbr.rel (0) target = $region97
    $region96: #{sklstm_step.1} parent=1 // pred_region
      %199 = dma.done [#allocation17], 256
    $region97: #{sklstm_step.1} parent=1 // pred_fallthru
      _
    // Predicated region
    $region98: #{sklstm_step.1} parent=1 // pred_check
      _
    $region99: #{sklstm_step.1} parent=1 // pred_check_branch
      %201 = sbr.rel (0) target = $region101
    $region100: #{sklstm_step.1} parent=1 // pred_region
      %202 = dma.done [#allocation17], 256
    $region101: #{sklstm_step.1} parent=1 // pred_fallthru
      _
    // Predicated region
    $region102: #{sklstm_step.1} parent=1 // pred_check
      _
    $region103: #{sklstm_step.1} parent=1 // pred_check_branch
      %204 = sbr.rel (0) target = $region105
    $region104: #{sklstm_step.1} parent=1 // pred_region
      %205 = dma.done [#allocation20], 16
    $region105: #{sklstm_step.1} parent=1 // pred_fallthru
      _
    // Predicated region
    $region106: #{sklstm_step.1} parent=1 // pred_check
      _
    $region107: #{sklstm_step.1} parent=1 // pred_check_branch
      %207 = sbr.rel (0) target = $region109
    $region108: #{sklstm_step.1} parent=1 // pred_region
      %208 = dma.done [#allocation20], 256
    $region109: #{sklstm_step.1} parent=1 // pred_fallthru
      _
    // Predicated region
    $region110: #{sklstm_step.1} parent=1 // pred_check
      _
    $region111: #{sklstm_step.1} parent=1 // pred_check_branch
      %210 = sbr.rel (0) target = $region113
    $region112: #{sklstm_step.1} parent=1 // pred_region
      %211 = dma.done [#allocation23], 256
    $region113: #{sklstm_step.1} parent=1 // pred_fallthru
      _
    %v213 = vld [vmem:[#allocation7] sm:$0x3]
    %v214 = vld [vmem:[%s3] sm:$0xf]
    %v215 = vld [vmem:[#allocation12] sm:$0xff]
    %v216 = vld [vmem:[#allocation4] sm:$0x3]
    %v217 = vpack.c.bf16 %v216, %v216
    %v218 = vld [vmem:[#allocation9] sm:$0x3]
    %v219 = vld [vmem:[#allocation15] sm:$0xf]
    %v220 = vld [vmem:[#allocation15 + $0x4] sm:$0xf]
    %v221 = vpack.c.bf16 %v213, %v213
    %v222 = vld [vmem:[#allocation16] sm:$0xf]
    %v223 = vld [vmem:[#allocation16 + $0x4] sm:$0xf]
    %v224 = vld [vmem:[#allocation16 + $0x8] sm:$0xf]
    %v225 = vld [vmem:[#allocation16 + $0xc] sm:$0xf]
    %v230 = vunpack.c.l.b16 %v222
    %v231 = vunpack.c.l.b16 %v223
    %v232 = vunpack.c.l.b16 %v224
    %v233 = vunpack.c.l.b16 %v225
    %v234 = vpack.c.b16 %v231, %v230
    %v235 = vpack.c.b16 %v233, %v232
    %vm238 = vcmask 261120
    %v240 = vsel %vm238, %v221, 0
    %242 = vmatprep.subr.bf16.mxu0 0
    %243 = vmatpush1.bf16.msra.mxu0 0
    %244 = vmatprep.subr.bf16.mxu0 0
    %245 = vmatpush1.bf16.msra.mxu0 0
    %246 = vmatprep.subr.bf16.mxu0 0
    %247 = vmatpush1.bf16.msra.mxu0 0
    %248 = vmatprep.subr.bf16.mxu0 0
    %249 = vmatpush1.bf16.msra.mxu0 0
    %250 = vmatprep.subr.bf16.mxu0 0
    %251 = vmatpush1.bf16.msra.mxu0 0
    %252 = vmatprep.subr.bf16.mxu0 0
    %253 = vmatpush1.bf16.msra.mxu0 0
    %254 = vmatprep.subr.bf16.mxu0 0
    %255 = vmatpush1.bf16.msra.mxu0 %v235
    %256 = vmatprep.subr.bf16.mxu0 0
    %257 = vmatpush1.bf16.msra.mxu0 %v234
    %258 = vmatprep.subr.bf16.mxu0 0
    %259 = vmatpush2.bf16.msra.mxu0 0
    %260 = vmatprep.subr.bf16.mxu0 0
    %261 = vmatpush2.bf16.msra.mxu0 0
    %262 = vmatprep.subr.bf16.mxu0 0
    %263 = vmatpush2.bf16.msra.mxu0 0
    %264 = vmatprep.subr.bf16.mxu0 0
    %265 = vmatpush2.bf16.msra.mxu0 0
    %266 = vmatprep.subr.bf16.mxu0 0
    %267 = vmatpush2.bf16.msra.mxu0 0
    %268 = vmatprep.subr.bf16.mxu0 0
    %269 = vmatpush2.bf16.msra.mxu0 0
    %270 = vmatprep.subr.bf16.mxu0 0
    %271 = vmatpush2.bf16.msra.mxu0 0
    %272 = vmatprep.subr.bf16.mxu0 0
    %273 = vmatpush2.bf16.msra.mxu0 0
    %274 = vmatprep.mubr.bf16.mxu0 0
    %275 = vmatmul.mubr.bf16.gmra.mxu0 %v240
    %v276 = vpop.f32.mrf.mxu0
    %v277 = vadd.f32 0.0, %v276
    %v278 = vpop.f32.mrf.mxu0
    %v279 = vpop.f32.mrf.mxu0
    %v280 = vpop.f32.mrf.mxu0
    %281 = vdwg.mxu0
    %v284 = vunpack.c.l.b16 %v219
    %v285 = vunpack.c.l.b16 %v220
    %v286 = vpack.c.b16 %v285, %v284
    %vm288 = vcmask 130048
    %v290 = vsel %vm288, %v217, 0
    %292 = vmatprep.subr.bf16.mxu0 0
    %293 = vmatpush1.bf16.msra.mxu0 0
    %294 = vmatprep.subr.bf16.mxu0 0
    %295 = vmatpush1.bf16.msra.mxu0 0
    %296 = vmatprep.subr.bf16.mxu0 0
    %297 = vmatpush1.bf16.msra.mxu0 0
    %298 = vmatprep.subr.bf16.mxu0 0
    %299 = vmatpush1.bf16.msra.mxu0 0
    %300 = vmatprep.subr.bf16.mxu0 0
    %301 = vmatpush1.bf16.msra.mxu0 0
    %302 = vmatprep.subr.bf16.mxu0 0
    %303 = vmatpush1.bf16.msra.mxu0 0
    %304 = vmatprep.subr.bf16.mxu0 0
    %305 = vmatpush1.bf16.msra.mxu0 0
    %306 = vmatprep.subr.bf16.mxu0 0
    %307 = vmatpush1.bf16.msra.mxu0 %v286
    %308 = vmatprep.subr.bf16.mxu0 0
    %309 = vmatpush2.bf16.msra.mxu0 0
    %310 = vmatprep.subr.bf16.mxu0 0
    %311 = vmatpush2.bf16.msra.mxu0 0
    %312 = vmatprep.subr.bf16.mxu0 0
    %313 = vmatpush2.bf16.msra.mxu0 0
    %314 = vmatprep.subr.bf16.mxu0 0
    %315 = vmatpush2.bf16.msra.mxu0 0
    %316 = vmatprep.subr.bf16.mxu0 0
    %317 = vmatpush2.bf16.msra.mxu0 0
    %318 = vmatprep.subr.bf16.mxu0 0
    %319 = vmatpush2.bf16.msra.mxu0 0
    %320 = vmatprep.subr.bf16.mxu0 0
    %321 = vmatpush2.bf16.msra.mxu0 0
    %322 = vmatprep.subr.bf16.mxu0 0
    %323 = vmatpush2.bf16.msra.mxu0 0
    %324 = vmatprep.mubr.bf16.mxu0 0
    %325 = vmatmul.mubr.bf16.gmra.mxu0 %v290
    %v326 = vpop.f32.mrf.mxu0
    %v327 = vadd.f32 %v277, %v326
    %v328 = vpop.f32.mrf.mxu0
    %v329 = vpop.f32.mrf.mxu0
    %v330 = vpop.f32.mrf.mxu0
    %331 = vdwg.mxu0
    %v332 = vld [vmem:[%s9] sm:$0x1]
    %v334 = vlaneseq
    %v335 = vshrl.u32 %v334, 7
    %v336 = vsub.s32 0, %v335
    %v337 = vrot.slane %v332, %v336
    %v339 = vadd.f32 %v327, %v337
    %v340 = vxor.u32 %v339, 2147483648
    %v341 = vmul.f32 %v340, 1.442695
    %v342 = vpow.pop %v341
    %v343 = vadd.f32 %v342, 1.0
    %v344 = vrcp.pop %v343
    %v345 = vmul.f32 1.0, %v344
    %v346 = vtanh.pop %v339
    %348 = vrot.lane.b32.xlu0 %v218, 32
    %v349 = vpop.permute.xlu0 %348
    %v351 = vmul.f32 %v345, %v349
    %353 = vrot.lane.b32.xlu0 %v346, 64
    %v354 = vpop.permute.xlu0 %353
    %v356 = vmul.f32 %v345, %v354
    %358 = vrot.lane.b32.xlu0 %v356, 32
    %v359 = vpop.permute.xlu0 %358
    %v361 = vadd.f32 %v351, %v359
    %v362 = vtanh.pop %v361
    %364 = vrot.lane.b32.xlu0 %v362, 64
    %v365 = vpop.permute.xlu0 %364
    %v367 = vmul.f32 %v345, %v365
    %vm368 = vcmask 254976
    %369 = vst.msk [vmem:[#allocation2] sm:$0x3] %vm368, %v213
    %371 = vrot.lane.b32.xlu0 %v367, 32
    %v372 = vpop.permute.xlu0 %371
    %374 = vst.msk [vmem:[#allocation2 + $0x2] sm:$0x3] %vm368, %v372
    %v375 = vld [vmem:[#allocation2] sm:$0xf]
    %v376 = vpack.c.bf16 %v375, %v375
    %v377 = vld [vmem:[#allocation10] sm:$0xf]
    %v378 = vld [vmem:[%s10] sm:$0xf]
    %v379 = vld [vmem:[%s10 + $0x4] sm:$0xf]
    %v380 = vld [vmem:[%s10 + $0x8] sm:$0xf]
    %v381 = vld [vmem:[%s10 + $0xc] sm:$0xf]
    %v382 = vpack.c.bf16 %v214, %v214
    %v383 = vld [vmem:[#allocation18] sm:$0xf]
    %v384 = vld [vmem:[#allocation18 + $0x4] sm:$0xf]
    %v385 = vld [vmem:[#allocation18 + $0x8] sm:$0xf]
    %v386 = vld [vmem:[#allocation18 + $0xc] sm:$0xf]
    %v391 = vunpack.c.l.b16 %v383
    %v392 = vunpack.c.l.b16 %v384
    %v393 = vunpack.c.l.b16 %v385
    %v394 = vunpack.c.l.b16 %v386
    %v395 = vpack.c.b16 %v392, %v391
    %v396 = vpack.c.b16 %v394, %v393
    %v400 = vsel %vm238, %v382, 0
    %402 = vmatprep.subr.bf16.mxu0 0
    %403 = vmatpush1.bf16.msra.mxu0 0
    %404 = vmatprep.subr.bf16.mxu0 0
    %405 = vmatpush1.bf16.msra.mxu0 0
    %406 = vmatprep.subr.bf16.mxu0 0
    %407 = vmatpush1.bf16.msra.mxu0 0
    %408 = vmatprep.subr.bf16.mxu0 0
    %409 = vmatpush1.bf16.msra.mxu0 0
    %410 = vmatprep.subr.bf16.mxu0 0
    %411 = vmatpush1.bf16.msra.mxu0 0
    %412 = vmatprep.subr.bf16.mxu0 0
    %413 = vmatpush1.bf16.msra.mxu0 0
    %414 = vmatprep.subr.bf16.mxu0 0
    %415 = vmatpush1.bf16.msra.mxu0 %v396
    %416 = vmatprep.subr.bf16.mxu0 0
    %417 = vmatpush1.bf16.msra.mxu0 %v395
    %418 = vmatprep.subr.bf16.mxu0 0
    %419 = vmatpush2.bf16.msra.mxu0 0
    %420 = vmatprep.subr.bf16.mxu0 0
    %421 = vmatpush2.bf16.msra.mxu0 0
    %422 = vmatprep.subr.bf16.mxu0 0
    %423 = vmatpush2.bf16.msra.mxu0 0
    %424 = vmatprep.subr.bf16.mxu0 0
    %425 = vmatpush2.bf16.msra.mxu0 0
    %426 = vmatprep.subr.bf16.mxu0 0
    %427 = vmatpush2.bf16.msra.mxu0 0
    %428 = vmatprep.subr.bf16.mxu0 0
    %429 = vmatpush2.bf16.msra.mxu0 0
    %430 = vmatprep.subr.bf16.mxu0 0
    %431 = vmatpush2.bf16.msra.mxu0 0
    %432 = vmatprep.subr.bf16.mxu0 0
    %433 = vmatpush2.bf16.msra.mxu0 0
    %434 = vmatprep.mubr.bf16.mxu0 0
    %435 = vmatmul.mubr.bf16.gmra.mxu0 %v400
    %v436 = vpop.f32.mrf.mxu0
    %v437 = vadd.f32 0.0, %v436
    %v438 = vpop.f32.mrf.mxu0
    %v439 = vpop.f32.mrf.mxu0
    %v440 = vpop.f32.mrf.mxu0
    %441 = vdwg.mxu0
    %v446 = vunpack.c.l.b16 %v378
    %v447 = vunpack.c.l.b16 %v379
    %v448 = vunpack.c.l.b16 %v380
    %v449 = vunpack.c.l.b16 %v381
    %v450 = vpack.c.b16 %v447, %v446
    %v451 = vpack.c.b16 %v449, %v448
    %v455 = vsel %vm238, %v376, 0
    %457 = vmatprep.subr.bf16.mxu0 0
    %458 = vmatpush1.bf16.msra.mxu0 0
    %459 = vmatprep.subr.bf16.mxu0 0
    %460 = vmatpush1.bf16.msra.mxu0 0
    %461 = vmatprep.subr.bf16.mxu0 0
    %462 = vmatpush1.bf16.msra.mxu0 0
    %463 = vmatprep.subr.bf16.mxu0 0
    %464 = vmatpush1.bf16.msra.mxu0 0
    %465 = vmatprep.subr.bf16.mxu0 0
    %466 = vmatpush1.bf16.msra.mxu0 0
    %467 = vmatprep.subr.bf16.mxu0 0
    %468 = vmatpush1.bf16.msra.mxu0 0
    %469 = vmatprep.subr.bf16.mxu0 0
    %470 = vmatpush1.bf16.msra.mxu0 %v451
    %471 = vmatprep.subr.bf16.mxu0 0
    %472 = vmatpush1.bf16.msra.mxu0 %v450
    %473 = vmatprep.subr.bf16.mxu0 0
    %474 = vmatpush2.bf16.msra.mxu0 0
    %475 = vmatprep.subr.bf16.mxu0 0
    %476 = vmatpush2.bf16.msra.mxu0 0
    %477 = vmatprep.subr.bf16.mxu0 0
    %478 = vmatpush2.bf16.msra.mxu0 0
    %479 = vmatprep.subr.bf16.mxu0 0
    %480 = vmatpush2.bf16.msra.mxu0 0
    %481 = vmatprep.subr.bf16.mxu0 0
    %482 = vmatpush2.bf16.msra.mxu0 0
    %483 = vmatprep.subr.bf16.mxu0 0
    %484 = vmatpush2.bf16.msra.mxu0 0
    %485 = vmatprep.subr.bf16.mxu0 0
    %486 = vmatpush2.bf16.msra.mxu0 0
    %487 = vmatprep.subr.bf16.mxu0 0
    %488 = vmatpush2.bf16.msra.mxu0 0
    %489 = vmatprep.mubr.bf16.mxu0 0
    %490 = vmatmul.mubr.bf16.gmra.mxu0 %v455
    %v491 = vpop.f32.mrf.mxu0
    %v492 = vadd.f32 %v437, %v491
    %v493 = vpop.f32.mrf.mxu0
    %v494 = vpop.f32.mrf.mxu0
    %v495 = vpop.f32.mrf.mxu0
    %496 = vdwg.mxu0
    %v497 = vld [vmem:[#allocation19] sm:$0x1]
    %v499 = vlaneseq
    %v500 = vshrl.u32 %v499, 7
    %v501 = vsub.s32 0, %v500
    %v502 = vrot.slane %v497, %v501
    %v504 = vadd.f32 %v492, %v502
    %v505 = vxor.u32 %v504, 2147483648
    %v506 = vmul.f32 %v505, 1.442695
    %v507 = vpow.pop %v506
    %v508 = vadd.f32 %v507, 1.0
    %v509 = vrcp.pop %v508
    %v510 = vmul.f32 1.0, %v509
    %v511 = vtanh.pop %v504
    %513 = vrot.lane.b32.xlu0 %v377, 32
    %v514 = vpop.permute.xlu0 %513
    %v516 = vmul.f32 %v510, %v514
    %518 = vrot.lane.b32.xlu0 %v511, 64
    %v519 = vpop.permute.xlu0 %518
    %v521 = vmul.f32 %v510, %v519
    %523 = vrot.lane.b32.xlu0 %v521, 32
    %v524 = vpop.permute.xlu0 %523
    %v526 = vadd.f32 %v516, %v524
    %v527 = vtanh.pop %v526
    %529 = vrot.lane.b32.xlu0 %v527, 64
    %v530 = vpop.permute.xlu0 %529
    %v532 = vmul.f32 %v510, %v530
    %534 = vrot.lane.b32.xlu0 %v532, 32
    %v535 = vpop.permute.xlu0 %534
    %vm537 = vcmask 257024
    %538 = vst.msk [vmem:[#allocation3] sm:$0xf] %vm537, %v535
    %539 = vst.msk [vmem:[#allocation3 + $0x4] sm:$0xf] %vm537, %v214
    %v540 = vld [vmem:[#allocation3] sm:$0xff]
    %v541 = vpack.c.bf16 %v540, %v540
    %v542 = vld [vmem:[#allocation13] sm:$0xff]
    %v543 = vld [vmem:[#allocation21] sm:$0xf]
    %v544 = vld [vmem:[#allocation21 + $0x4] sm:$0xf]
    %v545 = vld [vmem:[#allocation21 + $0x8] sm:$0xf]
    %v546 = vld [vmem:[#allocation21 + $0xc] sm:$0xf]
    %v547 = vpack.c.bf16 %v215, %v215
    %v548 = vld [vmem:[#allocation22] sm:$0xf]
    %v549 = vld [vmem:[#allocation22 + $0x4] sm:$0xf]
    %v550 = vld [vmem:[#allocation22 + $0x8] sm:$0xf]
    %v551 = vld [vmem:[#allocation22 + $0xc] sm:$0xf]
    %v556 = vunpack.c.l.b16 %v548
    %v557 = vunpack.c.l.b16 %v549
    %v558 = vunpack.c.l.b16 %v550
    %v559 = vunpack.c.l.b16 %v551
    %v560 = vpack.c.b16 %v557, %v556
    %v561 = vpack.c.b16 %v559, %v558
    %v565 = vsel %vm238, %v547, 0
    %567 = vmatprep.subr.bf16.mxu0 0
    %568 = vmatpush1.bf16.msra.mxu0 0
    %569 = vmatprep.subr.bf16.mxu0 0
    %570 = vmatpush1.bf16.msra.mxu0 0
    %571 = vmatprep.subr.bf16.mxu0 0
    %572 = vmatpush1.bf16.msra.mxu0 0
    %573 = vmatprep.subr.bf16.mxu0 0
    %574 = vmatpush1.bf16.msra.mxu0 0
    %575 = vmatprep.subr.bf16.mxu0 0
    %576 = vmatpush1.bf16.msra.mxu0 0
    %577 = vmatprep.subr.bf16.mxu0 0
    %578 = vmatpush1.bf16.msra.mxu0 0
    %579 = vmatprep.subr.bf16.mxu0 0
    %580 = vmatpush1.bf16.msra.mxu0 %v561
    %581 = vmatprep.subr.bf16.mxu0 0
    %582 = vmatpush1.bf16.msra.mxu0 %v560
    %583 = vmatprep.subr.bf16.mxu0 0
    %584 = vmatpush2.bf16.msra.mxu0 0
    %585 = vmatprep.subr.bf16.mxu0 0
    %586 = vmatpush2.bf16.msra.mxu0 0
    %587 = vmatprep.subr.bf16.mxu0 0
    %588 = vmatpush2.bf16.msra.mxu0 0
    %589 = vmatprep.subr.bf16.mxu0 0
    %590 = vmatpush2.bf16.msra.mxu0 0
    %591 = vmatprep.subr.bf16.mxu0 0
    %592 = vmatpush2.bf16.msra.mxu0 0
    %593 = vmatprep.subr.bf16.mxu0 0
    %594 = vmatpush2.bf16.msra.mxu0 0
    %595 = vmatprep.subr.bf16.mxu0 0
    %596 = vmatpush2.bf16.msra.mxu0 0
    %597 = vmatprep.subr.bf16.mxu0 0
    %598 = vmatpush2.bf16.msra.mxu0 0
    %599 = vmatprep.mubr.bf16.mxu0 0
    %600 = vmatmul.mubr.bf16.gmra.mxu0 %v565
    %v601 = vpop.f32.mrf.mxu0
    %v602 = vadd.f32 0.0, %v601
    %v603 = vpop.f32.mrf.mxu0
    %v604 = vpop.f32.mrf.mxu0
    %v605 = vpop.f32.mrf.mxu0
    %606 = vdwg.mxu0
    %v611 = vunpack.c.l.b16 %v543
    %v612 = vunpack.c.l.b16 %v544
    %v613 = vunpack.c.l.b16 %v545
    %v614 = vunpack.c.l.b16 %v546
    %v615 = vpack.c.b16 %v612, %v611
    %v616 = vpack.c.b16 %v614, %v613
    %v620 = vsel %vm238, %v541, 0
    %622 = vmatprep.subr.bf16.mxu0 0
    %623 = vmatpush1.bf16.msra.mxu0 0
    %624 = vmatprep.subr.bf16.mxu0 0
    %625 = vmatpush1.bf16.msra.mxu0 0
    %626 = vmatprep.subr.bf16.mxu0 0
    %627 = vmatpush1.bf16.msra.mxu0 0
    %628 = vmatprep.subr.bf16.mxu0 0
    %629 = vmatpush1.bf16.msra.mxu0 0
    %630 = vmatprep.subr.bf16.mxu0 0
    %631 = vmatpush1.bf16.msra.mxu0 0
    %632 = vmatprep.subr.bf16.mxu0 0
    %633 = vmatpush1.bf16.msra.mxu0 0
    %634 = vmatprep.subr.bf16.mxu0 0
    %635 = vmatpush1.bf16.msra.mxu0 %v616
    %636 = vmatprep.subr.bf16.mxu0 0
    %637 = vmatpush1.bf16.msra.mxu0 %v615
    %638 = vmatprep.subr.bf16.mxu0 0
    %639 = vmatpush2.bf16.msra.mxu0 0
    %640 = vmatprep.subr.bf16.mxu0 0
    %641 = vmatpush2.bf16.msra.mxu0 0
    %642 = vmatprep.subr.bf16.mxu0 0
    %643 = vmatpush2.bf16.msra.mxu0 0
    %644 = vmatprep.subr.bf16.mxu0 0
    %645 = vmatpush2.bf16.msra.mxu0 0
    %646 = vmatprep.subr.bf16.mxu0 0
    %647 = vmatpush2.bf16.msra.mxu0 0
    %648 = vmatprep.subr.bf16.mxu0 0
    %649 = vmatpush2.bf16.msra.mxu0 0
    %650 = vmatprep.subr.bf16.mxu0 0
    %651 = vmatpush2.bf16.msra.mxu0 0
    %652 = vmatprep.subr.bf16.mxu0 0
    %653 = vmatpush2.bf16.msra.mxu0 0
    %654 = vmatprep.mubr.bf16.mxu0 0
    %655 = vmatmul.mubr.bf16.gmra.mxu0 %v620
    %v656 = vpop.f32.mrf.mxu0
    %v657 = vadd.f32 %v602, %v656
    %v658 = vpop.f32.mrf.mxu0
    %v659 = vpop.f32.mrf.mxu0
    %v660 = vpop.f32.mrf.mxu0
    %661 = vdwg.mxu0
    %v662 = vld [vmem:[%s15] sm:$0x1]
    %v664 = vlaneseq
    %v665 = vshrl.u32 %v664, 7
    %v666 = vsub.s32 0, %v665
    %v667 = vrot.slane %v662, %v666
    %v669 = vadd.f32 %v657, %v667
    %v670 = vxor.u32 %v669, 2147483648
    %v671 = vmul.f32 %v670, 1.442695
    %v672 = vpow.pop %v671
    %v673 = vadd.f32 %v672, 1.0
    %v674 = vrcp.pop %v673
    %v675 = vmul.f32 1.0, %v674
    %v676 = vtanh.pop %v669
    %678 = vrot.lane.b32.xlu0 %v542, 32
    %v679 = vpop.permute.xlu0 %678
    %v681 = vmul.f32 %v675, %v679
    %683 = vrot.lane.b32.xlu0 %v676, 64
    %v684 = vpop.permute.xlu0 %683
    %v686 = vmul.f32 %v675, %v684
    %688 = vrot.lane.b32.xlu0 %v686, 32
    %v689 = vpop.permute.xlu0 %688
    %v691 = vadd.f32 %v681, %v689
    %v692 = vtanh.pop %v691
    %694 = vrot.lane.b32.xlu0 %v692, 64
    %v695 = vpop.permute.xlu0 %694
    %v697 = vmul.f32 %v675, %v695
    %698 = vst.msk [vmem:[#allocation24] sm:$0x3] %vm368, %v372
    %700 = vrot.lane.b32.xlu0 %v361, 96
    %v701 = vpop.permute.xlu0 %700
    %703 = vst.msk [vmem:[#allocation25] sm:$0x3] %vm368, %v701
    %704 = vst.msk [vmem:[#allocation27] sm:$0xf] %vm537, %v535
    %706 = vrot.lane.b32.xlu0 %v526, 96
    %v707 = vpop.permute.xlu0 %706
    %709 = vst.msk [vmem:[#allocation28] sm:$0xf] %vm537, %v707
    %711 = vrot.lane.b32.xlu0 %v697, 32
    %v712 = vpop.permute.xlu0 %711
    %714 = vst.msk [vmem:[#allocation30] sm:$0xff] %vm238, %v712
    %716 = vrot.lane.b32.xlu0 %v691, 96
    %v717 = vpop.permute.xlu0 %716
    %719 = vst.msk [vmem:[#allocation31] sm:$0xff] %vm238, %v717
    // Predicated region
    $region114: #{sklstm_step.1} parent=1 // pred_check
      _
    $region115: #{sklstm_step.1} parent=1 // pred_check_branch
      %721 = sbr.rel (0) target = $region117
    $region116: #{sklstm_step.1} parent=1 // pred_region
      %s723 = ssub.s32 32, 32
      %724 = vsyncadd [#allocation6], %s723
      %s726 = sshll.u32 [#allocation24], 4
      %s727 = int_to_ptr.vmem [resolvable:$true] %s726
      %729 = dma.vmem_to_hbm [thread:$0]  %s727, 32, %s16, [#allocation6]
    $region117: #{sklstm_step.1} parent=1 // pred_fallthru
      _
    // Predicated region
    $region118: #{sklstm_step.1} parent=1 // pred_check
      _
    $region119: #{sklstm_step.1} parent=1 // pred_check_branch
      %731 = sbr.rel (0) target = $region121
    $region120: #{sklstm_step.1} parent=1 // pred_region
      %s733 = ssub.s32 32, 32
      %734 = vsyncadd [#allocation26], %s733
      %s736 = sshll.u32 [#allocation25], 4
      %s737 = int_to_ptr.vmem [resolvable:$true] %s736
      %739 = dma.vmem_to_hbm [thread:$0]  %s737, 32, %s17, [#allocation26]
    $region121: #{sklstm_step.1} parent=1 // pred_fallthru
      _
    // Predicated region
    $region122: #{sklstm_step.1} parent=1 // pred_check
      _
    $region123: #{sklstm_step.1} parent=1 // pred_check_branch
      %741 = sbr.rel (0) target = $region125
    $region124: #{sklstm_step.1} parent=1 // pred_region
      %s743 = ssub.s32 64, 64
      %744 = vsyncadd [#allocation26], %s743
      %s746 = sshll.u32 [#allocation27], 4
      %s747 = int_to_ptr.vmem [resolvable:$true] %s746
      %749 = dma.vmem_to_hbm [thread:$0]  %s747, 64, %s18, [#allocation26]
    $region125: #{sklstm_step.1} parent=1 // pred_fallthru
      _
    // Predicated region
    $region126: #{sklstm_step.1} parent=1 // pred_check
      _
    $region127: #{sklstm_step.1} parent=1 // pred_check_branch
      %751 = sbr.rel (0) target = $region129
    $region128: #{sklstm_step.1} parent=1 // pred_region
      %s753 = ssub.s32 64, 64
      %754 = vsyncadd [#allocation29], %s753
      %s756 = sshll.u32 [#allocation28], 4
      %s757 = int_to_ptr.vmem [resolvable:$true] %s756
      %759 = dma.vmem_to_hbm [thread:$0]  %s757, 64, %s19, [#allocation29]
    $region129: #{sklstm_step.1} parent=1 // pred_fallthru
      _
    // Predicated region
    $region130: #{sklstm_step.1} parent=1 // pred_check
      _
    $region131: #{sklstm_step.1} parent=1 // pred_check_branch
      %761 = sbr.rel (0) target = $region133
    $region132: #{sklstm_step.1} parent=1 // pred_region
      %s763 = ssub.s32 128, 128
      %764 = vsyncadd [#allocation29], %s763
      %s766 = sshll.u32 [#allocation30], 4
      %s767 = int_to_ptr.vmem [resolvable:$true] %s766
      %769 = dma.vmem_to_hbm [thread:$0]  %s767, 128, %s20, [#allocation29]
    $region133: #{sklstm_step.1} parent=1 // pred_fallthru
      _
    // Predicated region
    $region134: #{sklstm_step.1} parent=1 // pred_check
      _
    $region135: #{sklstm_step.1} parent=1 // pred_check_branch
      %771 = sbr.rel (0) target = $region137
    $region136: #{sklstm_step.1} parent=1 // pred_region
      %s773 = ssub.s32 128, 128
      %774 = vsyncadd [#allocation32], %s773
      %s776 = sshll.u32 [#allocation31], 4
      %s777 = int_to_ptr.vmem [resolvable:$true] %s776
      %779 = dma.vmem_to_hbm [thread:$0]  %s777, 128, %s21, [#allocation32]
    $region137: #{sklstm_step.1} parent=1 // pred_fallthru
      _
    // Predicated region
    $region138: #{sklstm_step.1} parent=1 // pred_check
      _
    $region139: #{sklstm_step.1} parent=1 // pred_check_branch
      %781 = sbr.rel (0) target = $region141
    $region140: #{sklstm_step.1} parent=1 // pred_region
      %782 = dma.done [#allocation6], 32
    $region141: #{sklstm_step.1} parent=1 // pred_fallthru
      _
    // Predicated region
    $region142: #{sklstm_step.1} parent=1 // pred_check
      _
    $region143: #{sklstm_step.1} parent=1 // pred_check_branch
      %784 = sbr.rel (0) target = $region145
    $region144: #{sklstm_step.1} parent=1 // pred_region
      %785 = dma.done [#allocation26], 32
    $region145: #{sklstm_step.1} parent=1 // pred_fallthru
      _
    // Predicated region
    $region146: #{sklstm_step.1} parent=1 // pred_check
      _
    $region147: #{sklstm_step.1} parent=1 // pred_check_branch
      %787 = sbr.rel (0) target = $region149
    $region148: #{sklstm_step.1} parent=1 // pred_region
      %788 = dma.done [#allocation26], 64
    $region149: #{sklstm_step.1} parent=1 // pred_fallthru
      _
    // Predicated region
    $region150: #{sklstm_step.1} parent=1 // pred_check
      _
    $region151: #{sklstm_step.1} parent=1 // pred_check_branch
      %790 = sbr.rel (0) target = $region153
    $region152: #{sklstm_step.1} parent=1 // pred_region
      %791 = dma.done [#allocation29], 64
    $region153: #{sklstm_step.1} parent=1 // pred_fallthru
      _
    // Predicated region
    $region154: #{sklstm_step.1} parent=1 // pred_check
      _
    $region155: #{sklstm_step.1} parent=1 // pred_check_branch
      %793 = sbr.rel (0) target = $region157
    $region156: #{sklstm_step.1} parent=1 // pred_region
      %794 = dma.done [#allocation29], 128
    $region157: #{sklstm_step.1} parent=1 // pred_fallthru
      _
    // Predicated region
    $region158: #{sklstm_step.1} parent=1 // pred_check
      _
    $region159: #{sklstm_step.1} parent=1 // pred_check_branch
      %796 = sbr.rel (0) target = $region161
    $region160: #{sklstm_step.1} parent=1 // pred_region
      %797 = dma.done [#allocation32], 128
    $region161: #{sklstm_step.1} parent=1 // pred_fallthru
      _
    %798 = vsyncpa [#allocation5], 1
    %799 = vsyncpa [#allocation8], 1
    %800 = vsyncpa [#allocation11], 1
    %801 = vsyncpa [#allocation14], 1
    %802 = vsyncpa [#allocation17], 1
    %803 = vsyncpa [#allocation20], 1
    %804 = vsyncpa [#allocation23], 1
    %805 = vsyncpa [#allocation6], 1
    %806 = vsyncpa [#allocation26], 1
    %807 = vsyncpa [#allocation29], 1
    %808 = vsyncpa [#allocation32], 1

</llo_original>
